<compile_context>
chip_gen: v6e
topology: v6e:2x2x1
jax: 0.10.0
libtpu: 0.0.40
codegen_flags: <defaults>
</compile_context>

<pallas_src>
import functools

import jax
import jax.numpy as jnp
from jax.experimental import pallas as pl
from jax.experimental.pallas import tpu as pltpu

LANES = 128
SUBLANES = 8  # f32 accumulator sublane count


def _rmse_partial_kernel(yhat_ref, y_ref, out_ref, *, n_rows, need_mask):
    """Write this grid step's (8, 128) partial sum of squared differences."""
    d = yhat_ref[...].astype(jnp.float32) - y_ref[...].astype(jnp.float32)
    dsq = d * d

    br = dsq.shape[0]
    if need_mask:
        # Only the last grid block can be ragged; rows past n_rows hold
        # unspecified (Pallas-padded) data and must not contribute.
        row_idx = pl.program_id(0) * br + jax.lax.broadcasted_iota(
            jnp.int32, dsq.shape, 0)
        dsq = jnp.where(row_idx < n_rows, dsq, jnp.float32(0.0))

    # Fold the block's rows into one (8, 128) vreg with pure VPU adds
    # (no cross-lane/sublane XLU work in the hot loop).
    out_ref[...] = jnp.sum(dsq.reshape(br // SUBLANES, SUBLANES, LANES), axis=0)


def rmse_loss(yhat, y, eps=0.0, block_rows=2048):
    """Pallas implementation of RMSELoss.forward(yhat, y) -> scalar float32."""
    assert yhat.shape == y.shape, "yhat and y must have identical shapes"
    n_elems = int(yhat.size)
    assert n_elems > 0, "RMSE of an empty tensor is undefined"

    itemsize = int(jnp.dtype(yhat.dtype).itemsize)
    # Sub-32-bit dtypes pack along sublanes: min row multiple 8 / 16 / 32.
    sub = max(SUBLANES, 32 // max(itemsize, 1))

    flat_yh = yhat.reshape(-1)
    flat_y = y.reshape(-1)

    # Pad only up to one (sub, 128) tile so the flat length reshapes to a
    # lane-dense (rows, 128) slab.  Zero padding contributes 0 to the sum and
    # the mean divides by the true n_elems.  The common case (size already a
    # multiple of sub*128) takes the zero-copy path with no jnp.pad at all.
    min_tile = sub * LANES
    pad = (-n_elems) % min_tile
    if pad:
        flat_yh = jnp.pad(flat_yh, (0, pad))
        flat_y = jnp.pad(flat_y, (0, pad))

    rows = (n_elems + pad) // LANES          # multiple of `sub`
    yh2 = flat_yh.reshape(rows, LANES)
    y2 = flat_y.reshape(rows, LANES)

    # Block sizing: as big as possible (amortize per-step overhead), capped at
    # the row count so small inputs collapse to a single grid step, rounded to
    # the dtype's sublane multiple.  Default 2048 rows -> 2 inputs x 2 pipeline
    # buffers x 1 MiB = 4 MiB VMEM: safe on v5e / v6e / v7x without raising
    # vmem_limit_bytes.
    block_rows = max(sub, min(int(block_rows), rows))
    block_rows -= block_rows % sub

    num_blocks = -(-rows // block_rows)
    need_mask = (rows % block_rows) != 0

    kernel = functools.partial(
        _rmse_partial_kernel, n_rows=rows, need_mask=need_mask)

    cost = pl.CostEstimate(
        flops=3 * n_elems,
        transcendentals=0,
        bytes_accessed=2 * n_elems * itemsize
        + num_blocks * SUBLANES * LANES * 4,
    )

    partials = pl.pallas_call(
        kernel,
        out_shape=jax.ShapeDtypeStruct(
            (num_blocks, SUBLANES, LANES), jnp.float32),
        grid_spec=pltpu.PrefetchScalarGridSpec(
            num_scalar_prefetch=0,
            grid=(num_blocks,),
            in_specs=[
                pl.BlockSpec((block_rows, LANES), lambda i: (i, 0)),
                pl.BlockSpec((block_rows, LANES), lambda i: (i, 0)),
            ],
            # Each grid step owns its own output block -> no carried state.
            out_specs=pl.BlockSpec((None, SUBLANES, LANES),
                                   lambda i: (i, 0, 0)),
        ),
        compiler_params=pltpu.CompilerParams(
            # Independent per-block partial sums: shard grid steps across
            # TensorCores (2 TCs on v7x) instead of serializing on a single
            # resident accumulator.
            dimension_semantics=("parallel",),
        ),
        cost_estimate=cost,
    )(yh2, y2)

    # Tiny finalize: global sum of the per-block partials, mean, sqrt(+eps).
    sq_sum = jnp.sum(partials)
    return jnp.sqrt(sq_sum / jnp.float32(n_elems) + jnp.float32(eps))


if __name__ == "__main__":
    key = jax.random.PRNGKey(0)
    k1, k2, k3, k4 = jax.random.split(key, 4)

    # Small regression-style shapes: predictions / targets of shape (256, 8).
    yhat = jax.random.normal(k1, (256, 8), dtype=jnp.float32)
    y = jax.random.normal(k2, (256, 8), dtype=jnp.float32)
    eps = 0.0  # module default

    loss = rmse_loss(yhat, y, eps=eps)
    loss = jax.block_until_ready(loss)

    # Reference check (pure JAX) for correctness.
    ref = jnp.sqrt(jnp.mean((yhat - y) ** 2) + eps)
    assert jnp.allclose(loss, ref, rtol=1e-5, atol=1e-6), (loss, ref)

    # Second check: ragged grid (rows=24, block_rows=16) exercises the
    # in-kernel last-block row mask, plus a nonzero eps.
    yhat2 = jax.random.normal(k3, (3072,), dtype=jnp.float32)
    y2 = jax.random.normal(k4, (3072,), dtype=jnp.float32)
    loss2 = jax.block_until_ready(rmse_loss(yhat2, y2, eps=1e-6, block_rows=16))
    ref2 = jnp.sqrt(jnp.mean((yhat2 - y2) ** 2) + 1e-6)
    assert jnp.allclose(loss2, ref2, rtol=1e-5, atol=1e-6), (loss2, ref2)

    print("KERNEL_OK")
</pallas_src>

<mosaic_0001>
module attributes {stable_mosaic.version = 11 : i64} {
  func.func @_rmse_partial_kernel(%arg0: i32, %arg1: memref<16x128xf32, #tpu.memory_space<vmem>>, %arg2: memref<16x128xf32, #tpu.memory_space<vmem>>, %arg3: memref<1x8x128xf32, #tpu.memory_space<vmem>>) attributes {dimension_semantics = [#tpu.dimension_semantics<parallel>], iteration_bounds = array<i64: 1>, scalar_prefetch = 0 : i64, scratch_operands = 0 : i64, tpu.core_type = #tpu.core_type<tc>, window_params = [{transform_indices = @transform_0, window_bounds = array<i64: 16, 128>}, {transform_indices = @transform_1, window_bounds = array<i64: 16, 128>}, {transform_indices = @transform_2, window_bounds = array<i64: 1, 8, 128>}]} {
    %c0 = arith.constant 0 : index
    %c0_0 = arith.constant 0 : index
    %0 = vector.load %arg1[%c0, %c0_0] : memref<16x128xf32, #tpu.memory_space<vmem>>, vector<16x128xf32>
    %c0_1 = arith.constant 0 : index
    %c0_2 = arith.constant 0 : index
    %1 = vector.load %arg2[%c0_1, %c0_2] : memref<16x128xf32, #tpu.memory_space<vmem>>, vector<16x128xf32>
    %2 = arith.subf %0, %1 : vector<16x128xf32>
    %3 = arith.mulf %2, %2 : vector<16x128xf32>
    %4 = vector.shape_cast %3 : vector<16x128xf32> to vector<2x8x128xf32>
    %cst = arith.constant dense<0.000000e+00> : vector<8x128xf32>
    %5 = vector.multi_reduction <add>, %4, %cst [0] : vector<2x8x128xf32> to vector<8x128xf32>
    %c0_3 = arith.constant 0 : index
    %c0_4 = arith.constant 0 : index
    %c0_5 = arith.constant 0 : index
    %6 = vector.load %arg3[%c0_3, %c0_4, %c0_5] : memref<1x8x128xf32, #tpu.memory_space<vmem>>, vector<1x8x128xf32>
    %7 = vector.shape_cast %6 : vector<1x8x128xf32> to vector<8x128xf32>
    %8 = vector.shape_cast %5 : vector<8x128xf32> to vector<1x8x128xf32>
    tpu.vector_store %arg3[%c0_3, %c0_4, %c0_5], %8 {strides = array<i32>} : memref<1x8x128xf32, #tpu.memory_space<vmem>>, vector<1x8x128xf32>,
    return
  }
  func.func @transform_0(%arg0: i32) -> (i32, i32) {
    %c0_i32 = arith.constant 0 : i32
    %c0_i32_0 = arith.constant 0 : i32
    return %arg0, %c0_i32 : i32, i32
  }
  func.func @transform_1(%arg0: i32) -> (i32, i32) {
    %c0_i32 = arith.constant 0 : i32
    %c0_i32_0 = arith.constant 0 : i32
    return %arg0, %c0_i32 : i32, i32
  }
  func.func @transform_2(%arg0: i32) -> (i32, i32, i32) {
    %c0_i32 = arith.constant 0 : i32
    %c0_i32_0 = arith.constant 0 : i32
    %c0_i32_1 = arith.constant 0 : i32
    return %arg0, %c0_i32, %c0_i32_0 : i32, i32, i32
  }
}

</mosaic_0001>

<llo_original>
// kernel: tpu_custom_call.1
$region0: #{tpu_custom_call.1}
  #allocation0 [shape = 'u32[]', space=smem, size = 0x4, offset = 0x4, fixed_abs, tag = 'smem constant byte address 0x4 - core index']
  #allocation1 [shape = 'u32[144,128]{1,0:T(1,128)}', space=vmem, size = 0x12000, scoped, tag = 'internal scratch']
  %s0 = inlined_call_operand.hbm [shape: f32[16,128], index: 0, kind: input, shape index: {}]
  %s1 = inlined_call_operand.hbm [shape: f32[16,128], index: 1, kind: input, shape index: {}]
  %s2 = inlined_call_operand.hbm [shape: f32[1,8,128], index: 2, kind: output, shape index: {}]
  %s3 = sld [smem:[#allocation0]]
  $region26: #{tpu_custom_call.1} parent=0
    _
  %s5 = ssub.s32 1, %s3
  %s6 = scalar_select 0, %s5, %s3
  $region1: #{tpu_custom_call.1} parent=0
    #allocation2 [shape = 'u8[8192]{0}', space=vmem, size = 0x2000, scoped, tag = 'input window, operand 0, single buffered']
    #allocation3 [shape = 's32[1]{0}', space=sflag, size = 0x4, scoped, tag = 'scoped memory for tpu_custom_call.1']
    #allocation4 [shape = 's32[1]{0}', space=sflag, size = 0x4, scoped, tag = 'scoped memory for tpu_custom_call.1']
    #allocation5 [shape = 'u8[8192]{0}', space=vmem, size = 0x2000, scoped, tag = 'input window, operand 1, single buffered']
    #allocation6 [shape = 's32[1]{0}', space=sflag, size = 0x4, scoped, tag = 'scoped memory for tpu_custom_call.1']
    #allocation7 [shape = 'u8[4096]{0}', space=vmem, size = 0x1000, scoped, tag = 'output window, operand 0, single buffered']
    %7 = vsyncpa [#allocation3], 0
    %8 = vsyncpa [#allocation6], 0
    %9 = vsyncpa [#allocation4], 0
    // Predicated region
    $region2: #{tpu_custom_call.1} parent=1 // pred_check
      _
    $region3: #{tpu_custom_call.1} parent=1 // pred_check_branch
      %11 = sbr.rel (0) target = $region5
    $region4: #{tpu_custom_call.1} parent=1 // pred_region
      %s13 = ssub.s32 256, 256
      %14 = vsyncadd [#allocation3], %s13
      %s15 = sshll.u32 [#allocation2], 4
      %s16 = int_to_ptr.vmem [resolvable:$true] %s15
      %21 = dma.hbm_to_vmem [thread:$0]  %s0, 256, %s16, [#allocation3], 128, 128, 8
    $region5: #{tpu_custom_call.1} parent=1 // pred_fallthru
      _
    // Predicated region
    $region6: #{tpu_custom_call.1} parent=1 // pred_check
      _
    $region7: #{tpu_custom_call.1} parent=1 // pred_check_branch
      %23 = sbr.rel (0) target = $region9
    $region8: #{tpu_custom_call.1} parent=1 // pred_region
      %s25 = ssub.s32 256, 256
      %26 = vsyncadd [#allocation6], %s25
      %s27 = sshll.u32 [#allocation5], 4
      %s28 = int_to_ptr.vmem [resolvable:$true] %s27
      %33 = dma.hbm_to_vmem [thread:$0]  %s1, 256, %s28, [#allocation6], 128, 128, 8
    $region9: #{tpu_custom_call.1} parent=1 // pred_fallthru
      _
    // Predicated region
    $region10: #{tpu_custom_call.1} parent=1 // pred_check
      _
    $region11: #{tpu_custom_call.1} parent=1 // pred_check_branch
      %35 = sbr.rel (0) target = $region13
    $region12: #{tpu_custom_call.1} parent=1 // pred_region
      %36 = dma.done [#allocation3], 256
    $region13: #{tpu_custom_call.1} parent=1 // pred_fallthru
      _
    // Predicated region
    $region14: #{tpu_custom_call.1} parent=1 // pred_check
      _
    $region15: #{tpu_custom_call.1} parent=1 // pred_check_branch
      %38 = sbr.rel (0) target = $region17
    $region16: #{tpu_custom_call.1} parent=1 // pred_region
      %39 = dma.done [#allocation6], 256
    $region17: #{tpu_custom_call.1} parent=1 // pred_fallthru
      _
    %v40 = vld [vmem:[#allocation2] sm:$0xff]
    %v41 = vld [vmem:[#allocation2 + $0x8] sm:$0xff]
    %v42 = vld [vmem:[#allocation5] sm:$0xff]
    %v43 = vld [vmem:[#allocation5 + $0x8] sm:$0xff]
    %v44 = vsub.f32 %v40, %v42
    %v45 = vsub.f32 %v41, %v43
    %v46 = vmul.f32 %v44, %v44
    %v47 = vmul.f32 %v45, %v45
    %v48 = vadd.f32 %v46, %v47
    %49 = vst [vmem:[#allocation7] sm:$0xff] %v48
    // Predicated region
    $region18: #{tpu_custom_call.1} parent=1 // pred_check
      _
    $region19: #{tpu_custom_call.1} parent=1 // pred_check_branch
      %51 = sbr.rel (0) target = $region21
    $region20: #{tpu_custom_call.1} parent=1 // pred_region
      %s53 = ssub.s32 128, 128
      %54 = vsyncadd [#allocation4], %s53
      %s56 = sshll.u32 [#allocation7], 4
      %s57 = int_to_ptr.vmem [resolvable:$true] %s56
      %59 = dma.vmem_to_hbm [thread:$0]  %s57, 128, %s2, [#allocation4]
    $region21: #{tpu_custom_call.1} parent=1 // pred_fallthru
      _
    // Predicated region
    $region22: #{tpu_custom_call.1} parent=1 // pred_check
      _
    $region23: #{tpu_custom_call.1} parent=1 // pred_check_branch
      %61 = sbr.rel (0) target = $region25
    $region24: #{tpu_custom_call.1} parent=1 // pred_region
      %62 = dma.done [#allocation4], 128
    $region25: #{tpu_custom_call.1} parent=1 // pred_fallthru
      _
    %63 = vsyncpa [#allocation3], 1
    %64 = vsyncpa [#allocation6], 1
    %65 = vsyncpa [#allocation4], 1

</llo_original>
